<compile_context>
chip_gen: v7x
topology: tpu7x:2x2x1
jax: 0.10.0
libtpu: 0.0.40
codegen_flags: <defaults>
</compile_context>

<pallas_src>
import jax
import jax.numpy as jnp
from jax.experimental import pallas as pl
from jax.experimental.pallas import tpu as pltpu


# --------------------------------------------------------------------------
# small helpers
# --------------------------------------------------------------------------
def _round_up(n, m):
    return ((n + m - 1) // m) * m


def _pad2(a, rows, cols, dtype):
    a = jnp.asarray(a, dtype)
    return jnp.pad(a, ((0, rows - a.shape[0]), (0, cols - a.shape[1])))


def _device_kind():
    try:
        return jax.devices()[0].device_kind.lower()
    except Exception:  # pragma: no cover - detection is best effort
        return ""


def _spec(shape, index_map, n_buf=None):
    """BlockSpec with optional explicit buffer count (falls back cleanly)."""
    if n_buf is not None:
        try:
            return pl.BlockSpec(shape, index_map, pipeline_mode=pl.Buffered(n_buf))
        except (TypeError, AttributeError):
            pass
    return pl.BlockSpec(shape, index_map)


def _vmem_footprint(tm, tk, num_k, Fp, Hp, Ap, obs_itemsize):
    obs_buf = 2 * tm * tk * obs_itemsize                  # double-buffered obs tile
    w1_buf = (2 if num_k > 1 else 1) * tk * Fp * 2        # bf16 w1 block(s)
    w_res = (Fp * Hp + Hp * Hp + Hp * Ap) * 2             # resident bf16 policy weights
    vecs = (3 * Fp + 2 * Hp + Ap) * 4                     # biases / gamma / beta (f32)
    out_buf = 2 * tm * Ap * 4                             # double-buffered mu tile
    acc = 0 if num_k == 1 else tm * Fp * 4                # f32 accumulator scratch
    return obs_buf + w1_buf + w_res + vecs + out_buf + acc


# --------------------------------------------------------------------------
# kernel
# --------------------------------------------------------------------------
def _make_actor_kernel(feature_dim, bf16_act, single_k):
    act_dtype = jnp.bfloat16 if bf16_act else jnp.float32
    inv_f = 1.0 / float(feature_dim)

    def finish(h, b1_ref, gamma_ref, beta_ref,
               w2_ref, b2_ref, w3_ref, b3_ref, w4_ref, b4_ref, mu_ref):
        # ---- trunk tail: bias + LayerNorm + Tanh (stats in f32) ----
        h = h + b1_ref[...]
        # One-pass LN statistics over the REAL feature_dim.  Padded lanes of
        # h are exactly zero (w1/b1 lane padding is zero), so s1/s2 are the
        # sums over the real features and no mask is needed.
        s1 = jnp.sum(h, axis=-1, keepdims=True)
        s2 = jnp.sum(h * h, axis=-1, keepdims=True)
        mean = s1 * inv_f
        var = jnp.maximum(s2 * inv_f - mean * mean, 0.0)
        h = (h - mean) * jax.lax.rsqrt(var + 1e-5)
        h = h * gamma_ref[...] + beta_ref[...]
        h = jnp.tanh(h.astype(act_dtype))

        # ---- policy: Linear -> ReLU -> Linear -> ReLU -> Linear -> tanh ----
        h = jnp.dot(h.astype(jnp.bfloat16), w2_ref[...],
                    preferred_element_type=jnp.float32) + b2_ref[...]
        h = jnp.maximum(h.astype(act_dtype), 0.0)
        h = jnp.dot(h.astype(jnp.bfloat16), w3_ref[...],
                    preferred_element_type=jnp.float32) + b3_ref[...]
        h = jnp.maximum(h.astype(act_dtype), 0.0)
        mu = jnp.dot(h.astype(jnp.bfloat16), w4_ref[...],
                     preferred_element_type=jnp.float32) + b4_ref[...]
        mu_ref[...] = jnp.tanh(mu).astype(mu_ref.dtype)

    if single_k:
        def kernel(obs_ref, w1_ref, b1_ref, gamma_ref, beta_ref,
                   w2_ref, b2_ref, w3_ref, b3_ref, w4_ref, b4_ref, mu_ref):
            h = jnp.dot(obs_ref[...].astype(jnp.bfloat16), w1_ref[...],
                        preferred_element_type=jnp.float32)
            finish(h, b1_ref, gamma_ref, beta_ref,
                   w2_ref, b2_ref, w3_ref, b3_ref, w4_ref, b4_ref, mu_ref)
    else:
        def kernel(obs_ref, w1_ref, b1_ref, gamma_ref, beta_ref,
                   w2_ref, b2_ref, w3_ref, b3_ref, w4_ref, b4_ref, mu_ref,
                   acc_ref):
            k = pl.program_id(1)

            @pl.when(k == 0)
            def _():
                acc_ref[...] = jnp.zeros_like(acc_ref)

            acc_ref[...] += jnp.dot(obs_ref[...].astype(jnp.bfloat16),
                                    w1_ref[...],
                                    preferred_element_type=jnp.float32)

            @pl.when(k == pl.num_programs(1) - 1)
            def _():
                finish(acc_ref[...], b1_ref, gamma_ref, beta_ref,
                       w2_ref, b2_ref, w3_ref, b3_ref, w4_ref, b4_ref, mu_ref)

    return kernel


# --------------------------------------------------------------------------
# parameter preparation (call ONCE, outside the hot path)
# --------------------------------------------------------------------------
def prepare_actor_params(params):
    """Pad lane dims to 128-multiples and cast matmul weights to bf16, once.

    Re-padding per forward call costs a full HBM round trip of every weight,
    so call this at init / after each parameter update and reuse the result.
    All padding is zero — the kernel's unmasked LayerNorm relies on it.
    """
    repr_dim, feature_dim = params["w1"].shape
    hidden_dim = params["w2"].shape[1]
    action_dim = params["w4"].shape[1]
    Fp = _round_up(feature_dim, 128)
    Hp = _round_up(hidden_dim, 128)
    Ap = _round_up(action_dim, 128)
    return {
        # w1 rows stay at repr_dim so obs never needs a padded copy per call.
        "w1": _pad2(params["w1"], repr_dim, Fp, jnp.bfloat16),
        "b1": _pad2(params["b1"], 1, Fp, jnp.float32),
        "gamma": _pad2(params["ln_gamma"], 1, Fp, jnp.float32),
        "beta": _pad2(params["ln_beta"], 1, Fp, jnp.float32),
        "w2": _pad2(params["w2"], Fp, Hp, jnp.bfloat16),
        "b2": _pad2(params["b2"], 1, Hp, jnp.float32),
        "w3": _pad2(params["w3"], Hp, Hp, jnp.bfloat16),
        "b3": _pad2(params["b3"], 1, Hp, jnp.float32),
        "w4": _pad2(params["w4"], Hp, Ap, jnp.bfloat16),
        "b4": _pad2(params["b4"], 1, Ap, jnp.float32),
        "dims": (repr_dim, feature_dim, hidden_dim, action_dim),
    }


# --------------------------------------------------------------------------
# forward wrapper
# --------------------------------------------------------------------------
def actor_forward(obs, prepped, std, *, batch_tile=256, bf16_act=None):
    """Returns (mu, std) — the parameters of utils.TruncatedNormal(mu, std).

    `prepped` must come from prepare_actor_params (padded / bf16 weights).
    Passing obs already in bf16 halves the dominant HBM stream for large
    repr_dim; any float dtype is accepted and cast in-kernel.
    """
    repr_dim, feature_dim, hidden_dim, action_dim = prepped["dims"]
    B, R = obs.shape
    assert R == repr_dim, f"obs last dim {R} != repr_dim {repr_dim}"
    Fp = prepped["w1"].shape[1]
    Hp = prepped["w2"].shape[1]
    Ap = prepped["w4"].shape[1]

    kind = _device_kind()
    if bf16_act is None:
        # bf16 tanh/ReLU only pays off on chips with bf16 VPU/EUP (v6e/v7x+).
        bf16_act = not any(g in kind for g in ("v2", "v3", "v4", "v5"))
    # v7x has two TensorCores per chip; make sure the "parallel" batch axis
    # has >= 2 steps to shard across them.
    want_two_batch_steps = ("v7" in kind) or ("7x" in kind)

    # ---- K tiling of repr_dim (only when it divides into 128-multiples) ----
    tk = R
    if R % 128 == 0 and R > 1024:
        for cand in (1024, 512, 256, 128):
            if R % cand == 0:
                tk = cand
                break
    num_k = R // tk
    single_k = num_k == 1

    # ---- batch tile: MXU-friendly, >=2 steps on v7x, VMEM-bounded ----
    obs_itemsize = obs.dtype.itemsize
    Bp8 = _round_up(B, 8)
    tm = _round_up(min(batch_tile, Bp8), 8)
    if want_two_batch_steps and Bp8 > 8 and Bp8 // tm < 2:
        tm = max(8, _round_up((Bp8 + 1) // 2, 8))
    VMEM_BUDGET = 40 * 1024 * 1024  # safe on v7x (64 MiB phys) and v5e
    while _vmem_footprint(tm, tk, num_k, Fp, Hp, Ap, obs_itemsize) > VMEM_BUDGET and tm > 8:
        tm = max(8, _round_up(tm // 2, 8))

    Bp = _round_up(Bp8, tm)
    obs_in = obs if Bp == B else jnp.pad(obs, ((0, Bp - B), (0, 0)))
    grid = (Bp // tm, num_k)

    # ---- BlockSpecs: obs/mu (and w1 when K-tiled) pipelined, weights resident
    #      and single-buffered (constant index -> one VMEM copy). ----
    in_specs = [
        _spec((tm, tk), lambda i, k: (i, k)),                       # obs tile
        _spec((tk, Fp), lambda i, k: (k, 0), 1 if single_k else 2),  # w1
        _spec((1, Fp), lambda i, k: (0, 0), 1),                     # b1
        _spec((1, Fp), lambda i, k: (0, 0), 1),                     # gamma
        _spec((1, Fp), lambda i, k: (0, 0), 1),                     # beta
        _spec((Fp, Hp), lambda i, k: (0, 0), 1),                    # w2
        _spec((1, Hp), lambda i, k: (0, 0), 1),                     # b2
        _spec((Hp, Hp), lambda i, k: (0, 0), 1),                    # w3
        _spec((1, Hp), lambda i, k: (0, 0), 1),                     # b3
        _spec((Hp, Ap), lambda i, k: (0, 0), 1),                    # w4
        _spec((1, Ap), lambda i, k: (0, 0), 1),                     # b4
    ]
    out_specs = pl.BlockSpec((tm, Ap), lambda i, k: (i, 0))
    scratch_shapes = [] if single_k else [pltpu.VMEM((tm, Fp), jnp.float32)]

    footprint = _vmem_footprint(tm, tk, num_k, Fp, Hp, Ap, obs_itemsize)
    vmem_limit = int(min(max(2 * footprint + (8 << 20), 32 << 20), 56 << 20))

    flops = 2 * B * (R * feature_dim + feature_dim * hidden_dim
                     + hidden_dim * hidden_dim + hidden_dim * action_dim)
    transcendentals = B * (feature_dim + action_dim)
    bytes_accessed = (
        obs_in.size * obs_itemsize
        + sum(prepped[n].size * prepped[n].dtype.itemsize
              for n in ("w1", "b1", "gamma", "beta",
                        "w2", "b2", "w3", "b3", "w4", "b4"))
        + Bp * Ap * 4)

    kernel = _make_actor_kernel(feature_dim, bf16_act, single_k)

    mu_full = pl.pallas_call(
        kernel,
        out_shape=jax.ShapeDtypeStruct((Bp, Ap), jnp.float32),
        grid=grid,
        in_specs=in_specs,
        out_specs=out_specs,
        scratch_shapes=scratch_shapes,
        compiler_params=pltpu.CompilerParams(
            dimension_semantics=("parallel", "arbitrary"),
            vmem_limit_bytes=vmem_limit,
        ),
        cost_estimate=pl.CostEstimate(
            flops=flops,
            transcendentals=transcendentals,
            bytes_accessed=bytes_accessed,
        ),
    )(obs_in,
      prepped["w1"], prepped["b1"], prepped["gamma"], prepped["beta"],
      prepped["w2"], prepped["b2"],
      prepped["w3"], prepped["b3"],
      prepped["w4"], prepped["b4"])

    mu = mu_full[:B, :action_dim]
    std_out = jnp.full_like(mu, std)   # scalar broadcast; no kernel output needed
    return mu, std_out


# --------------------------------------------------------------------------
# synthetic init + pure-JAX reference
# --------------------------------------------------------------------------
def init_actor_params(key, repr_dim, action_dim, feature_dim, hidden_dim):
    """Deterministic synthetic init (shapes match the nn.Module __init__)."""
    ks = jax.random.split(key, 8)

    def linear(kw, kb, fan_in, fan_out):
        # weights stored [in, out] so the kernel does x @ W + b
        w = jax.random.normal(kw, (fan_in, fan_out), jnp.float32) * (1.0 / jnp.sqrt(fan_in))
        b = jax.random.normal(kb, (1, fan_out), jnp.float32) * 0.01
        return w, b

    w1, b1 = linear(ks[0], ks[1], repr_dim, feature_dim)
    w2, b2 = linear(ks[2], ks[3], feature_dim, hidden_dim)
    w3, b3 = linear(ks[4], ks[5], hidden_dim, hidden_dim)
    w4, b4 = linear(ks[6], ks[7], hidden_dim, action_dim)

    return {
        "w1": w1, "b1": b1,
        "ln_gamma": jnp.ones((1, feature_dim), jnp.float32),
        "ln_beta": jnp.zeros((1, feature_dim), jnp.float32),
        "w2": w2, "b2": b2,
        "w3": w3, "b3": b3,
        "w4": w4, "b4": b4,
    }


def actor_reference(obs, params, std):
    """Plain-JAX f32 reference for correctness checking."""
    h = obs @ params["w1"] + params["b1"]
    mean = jnp.mean(h, axis=-1, keepdims=True)
    var = jnp.mean((h - mean) ** 2, axis=-1, keepdims=True)
    h = (h - mean) / jnp.sqrt(var + 1e-5)
    h = h * params["ln_gamma"] + params["ln_beta"]
    h = jnp.tanh(h)
    h = jax.nn.relu(h @ params["w2"] + params["b2"])
    h = jax.nn.relu(h @ params["w3"] + params["b3"])
    mu = jnp.tanh(h @ params["w4"] + params["b4"])
    return mu, jnp.ones_like(mu) * std


if __name__ == "__main__":
    # Small shapes consistent with the module: obs is [batch, repr_dim].
    B, repr_dim, feature_dim, hidden_dim, action_dim = 8, 32, 32, 32, 4
    std_scalar = 0.2

    key = jax.random.PRNGKey(0)
    k_obs, k_params = jax.random.split(key)
    obs = jax.random.normal(k_obs, (B, repr_dim), jnp.float32)
    params = init_actor_params(k_params, repr_dim, action_dim, feature_dim, hidden_dim)

    # Pad / cast the weights ONCE (outside the hot path), then run forward.
    prepped = prepare_actor_params(params)
    mu, std_out = actor_forward(obs, prepped, std_scalar)
    jax.block_until_ready((mu, std_out))

    mu_ref, std_ref = actor_reference(obs, params, std_scalar)
    assert mu.shape == (B, action_dim) and std_out.shape == (B, action_dim)
    # bf16 matmuls / activations (f32 accumulation + f32 LN stats) vs f32
    # reference -> loosened tolerance.
    assert bool(jnp.all(jnp.isfinite(mu)))
    assert jnp.allclose(mu, mu_ref, atol=5e-2, rtol=5e-2)
    assert jnp.allclose(std_out, std_ref, atol=1e-6)

    print("KERNEL_OK")
</pallas_src>

<mosaic_0001>
module attributes {stable_mosaic.version = 11 : i64} {
  func.func @kernel(%arg0: i32, %arg1: i32, %arg2: memref<8x32xf32, #tpu.memory_space<vmem>>, %arg3: memref<32x128xbf16, #tpu.memory_space<vmem>>, %arg4: memref<1x128xf32, #tpu.memory_space<vmem>>, %arg5: memref<1x128xf32, #tpu.memory_space<vmem>>, %arg6: memref<1x128xf32, #tpu.memory_space<vmem>>, %arg7: memref<128x128xbf16, #tpu.memory_space<vmem>>, %arg8: memref<1x128xf32, #tpu.memory_space<vmem>>, %arg9: memref<128x128xbf16, #tpu.memory_space<vmem>>, %arg10: memref<1x128xf32, #tpu.memory_space<vmem>>, %arg11: memref<128x128xbf16, #tpu.memory_space<vmem>>, %arg12: memref<1x128xf32, #tpu.memory_space<vmem>>, %arg13: memref<8x128xf32, #tpu.memory_space<vmem>>) attributes {dimension_semantics = [#tpu.dimension_semantics<parallel>, #tpu.dimension_semantics<arbitrary>], iteration_bounds = array<i64: 1, 1>, scalar_prefetch = 0 : i64, scratch_operands = 0 : i64, tpu.core_type = #tpu.core_type<tc>, window_params = [{transform_indices = @transform_0, window_bounds = array<i64: 8, 32>}, {pipeline_mode = #tpu.pipeline_mode<synchronous>, transform_indices = @transform_1, window_bounds = array<i64: 32, 128>}, {pipeline_mode = #tpu.pipeline_mode<synchronous>, transform_indices = @transform_2, window_bounds = array<i64: 1, 128>}, {pipeline_mode = #tpu.pipeline_mode<synchronous>, transform_indices = @transform_3, window_bounds = array<i64: 1, 128>}, {pipeline_mode = #tpu.pipeline_mode<synchronous>, transform_indices = @transform_4, window_bounds = array<i64: 1, 128>}, {pipeline_mode = #tpu.pipeline_mode<synchronous>, transform_indices = @transform_5, window_bounds = array<i64: 128, 128>}, {pipeline_mode = #tpu.pipeline_mode<synchronous>, transform_indices = @transform_6, window_bounds = array<i64: 1, 128>}, {pipeline_mode = #tpu.pipeline_mode<synchronous>, transform_indices = @transform_7, window_bounds = array<i64: 128, 128>}, {pipeline_mode = #tpu.pipeline_mode<synchronous>, transform_indices = @transform_8, window_bounds = array<i64: 1, 128>}, {pipeline_mode = #tpu.pipeline_mode<synchronous>, transform_indices = @transform_9, window_bounds = array<i64: 128, 128>}, {pipeline_mode = #tpu.pipeline_mode<synchronous>, transform_indices = @transform_10, window_bounds = array<i64: 1, 128>}, {transform_indices = @transform_11, window_bounds = array<i64: 8, 128>}]} {
    %c0 = arith.constant 0 : index
    %c0_0 = arith.constant 0 : index
    %0 = vector.load %arg2[%c0, %c0_0] : memref<8x32xf32, #tpu.memory_space<vmem>>, vector<8x32xf32>
    %1 = arith.truncf %0 : vector<8x32xf32> to vector<8x32xbf16>
    %c0_1 = arith.constant 0 : index
    %c0_2 = arith.constant 0 : index
    %2 = vector.load %arg3[%c0_1, %c0_2] : memref<32x128xbf16, #tpu.memory_space<vmem>>, vector<32x128xbf16>
    %cst = arith.constant dense<0.000000e+00> : vector<8x128xf32>
    %3 = tpu.matmul %1, %2, %cst {dimension_numbers = #tpu.dot_dimension_numbers<[1], [0], [0], [1], [0, 0, 1, 1], [], []>} : vector<8x32xbf16>, vector<32x128xbf16>, vector<8x128xf32> -> vector<8x128xf32>
    %c0_3 = arith.constant 0 : index
    %c0_4 = arith.constant 0 : index
    %4 = vector.load %arg4[%c0_3, %c0_4] : memref<1x128xf32, #tpu.memory_space<vmem>>, vector<1x128xf32>
    %5 = vector.broadcast %4 : vector<1x128xf32> to vector<8x128xf32>
    %6 = arith.addf %3, %5 : vector<8x128xf32>
    %cst_5 = arith.constant dense<0.000000e+00> : vector<8xf32>
    %7 = vector.multi_reduction <add>, %6, %cst_5 [1] : vector<8x128xf32> to vector<8xf32>
    %8 = vector.shape_cast %7 : vector<8xf32> to vector<8x1xf32>
    %9 = arith.mulf %6, %6 : vector<8x128xf32>
    %cst_6 = arith.constant dense<0.000000e+00> : vector<8xf32>
    %10 = vector.multi_reduction <add>, %9, %cst_6 [1] : vector<8x128xf32> to vector<8xf32>
    %11 = vector.shape_cast %10 : vector<8xf32> to vector<8x1xf32>
    %cst_7 = arith.constant 3.125000e-02 : f32
    %12 = vector.broadcast %cst_7 : f32 to vector<8x1xf32>
    %13 = arith.mulf %8, %12 : vector<8x1xf32>
    %cst_8 = arith.constant 3.125000e-02 : f32
    %14 = vector.broadcast %cst_8 : f32 to vector<8x1xf32>
    %15 = arith.mulf %11, %14 : vector<8x1xf32>
    %16 = arith.mulf %13, %13 : vector<8x1xf32>
    %17 = arith.subf %15, %16 : vector<8x1xf32>
    %cst_9 = arith.constant 0.000000e+00 : f32
    %18 = vector.broadcast %cst_9 : f32 to vector<8x1xf32>
    %19 = arith.maximumf %17, %18 : vector<8x1xf32>
    %20 = vector.broadcast %13 : vector<8x1xf32> to vector<8x128xf32>
    %21 = arith.subf %6, %20 : vector<8x128xf32>
    %cst_10 = arith.constant 9.99999974E-6 : f32
    %22 = vector.broadcast %cst_10 : f32 to vector<8x1xf32>
    %23 = arith.addf %19, %22 : vector<8x1xf32>
    %24 = math.rsqrt %23 : vector<8x1xf32>
    %25 = vector.broadcast %24 : vector<8x1xf32> to vector<8x128xf32>
    %26 = arith.mulf %21, %25 : vector<8x128xf32>
    %c0_11 = arith.constant 0 : index
    %c0_12 = arith.constant 0 : index
    %27 = vector.load %arg5[%c0_11, %c0_12] : memref<1x128xf32, #tpu.memory_space<vmem>>, vector<1x128xf32>
    %28 = vector.broadcast %27 : vector<1x128xf32> to vector<8x128xf32>
    %29 = arith.mulf %26, %28 : vector<8x128xf32>
    %c0_13 = arith.constant 0 : index
    %c0_14 = arith.constant 0 : index
    %30 = vector.load %arg6[%c0_13, %c0_14] : memref<1x128xf32, #tpu.memory_space<vmem>>, vector<1x128xf32>
    %31 = vector.broadcast %30 : vector<1x128xf32> to vector<8x128xf32>
    %32 = arith.addf %29, %31 : vector<8x128xf32>
    %33 = arith.truncf %32 : vector<8x128xf32> to vector<8x128xbf16>
    %34 = math.tanh %33 : vector<8x128xbf16>
    %c0_15 = arith.constant 0 : index
    %c0_16 = arith.constant 0 : index
    %35 = vector.load %arg7[%c0_15, %c0_16] : memref<128x128xbf16, #tpu.memory_space<vmem>>, vector<128x128xbf16>
    %cst_17 = arith.constant dense<0.000000e+00> : vector<8x128xf32>
    %36 = tpu.matmul %34, %35, %cst_17 {dimension_numbers = #tpu.dot_dimension_numbers<[1], [0], [0], [1], [0, 0, 1, 1], [], []>} : vector<8x128xbf16>, vector<128x128xbf16>, vector<8x128xf32> -> vector<8x128xf32>
    %c0_18 = arith.constant 0 : index
    %c0_19 = arith.constant 0 : index
    %37 = vector.load %arg8[%c0_18, %c0_19] : memref<1x128xf32, #tpu.memory_space<vmem>>, vector<1x128xf32>
    %38 = vector.broadcast %37 : vector<1x128xf32> to vector<8x128xf32>
    %39 = arith.addf %36, %38 : vector<8x128xf32>
    %40 = arith.truncf %39 : vector<8x128xf32> to vector<8x128xbf16>
    %cst_20 = arith.constant 0.000000e+00 : bf16
    %41 = vector.broadcast %cst_20 : bf16 to vector<8x128xbf16>
    %42 = arith.maximumf %40, %41 : vector<8x128xbf16>
    %c0_21 = arith.constant 0 : index
    %c0_22 = arith.constant 0 : index
    %43 = vector.load %arg9[%c0_21, %c0_22] : memref<128x128xbf16, #tpu.memory_space<vmem>>, vector<128x128xbf16>
    %cst_23 = arith.constant dense<0.000000e+00> : vector<8x128xf32>
    %44 = tpu.matmul %42, %43, %cst_23 {dimension_numbers = #tpu.dot_dimension_numbers<[1], [0], [0], [1], [0, 0, 1, 1], [], []>} : vector<8x128xbf16>, vector<128x128xbf16>, vector<8x128xf32> -> vector<8x128xf32>
    %c0_24 = arith.constant 0 : index
    %c0_25 = arith.constant 0 : index
    %45 = vector.load %arg10[%c0_24, %c0_25] : memref<1x128xf32, #tpu.memory_space<vmem>>, vector<1x128xf32>
    %46 = vector.broadcast %45 : vector<1x128xf32> to vector<8x128xf32>
    %47 = arith.addf %44, %46 : vector<8x128xf32>
    %48 = arith.truncf %47 : vector<8x128xf32> to vector<8x128xbf16>
    %cst_26 = arith.constant 0.000000e+00 : bf16
    %49 = vector.broadcast %cst_26 : bf16 to vector<8x128xbf16>
    %50 = arith.maximumf %48, %49 : vector<8x128xbf16>
    %c0_27 = arith.constant 0 : index
    %c0_28 = arith.constant 0 : index
    %51 = vector.load %arg11[%c0_27, %c0_28] : memref<128x128xbf16, #tpu.memory_space<vmem>>, vector<128x128xbf16>
    %cst_29 = arith.constant dense<0.000000e+00> : vector<8x128xf32>
    %52 = tpu.matmul %50, %51, %cst_29 {dimension_numbers = #tpu.dot_dimension_numbers<[1], [0], [0], [1], [0, 0, 1, 1], [], []>} : vector<8x128xbf16>, vector<128x128xbf16>, vector<8x128xf32> -> vector<8x128xf32>
    %c0_30 = arith.constant 0 : index
    %c0_31 = arith.constant 0 : index
    %53 = vector.load %arg12[%c0_30, %c0_31] : memref<1x128xf32, #tpu.memory_space<vmem>>, vector<1x128xf32>
    %54 = vector.broadcast %53 : vector<1x128xf32> to vector<8x128xf32>
    %55 = arith.addf %52, %54 : vector<8x128xf32>
    %56 = math.tanh %55 : vector<8x128xf32>
    %c0_32 = arith.constant 0 : index
    %c0_33 = arith.constant 0 : index
    %57 = vector.load %arg13[%c0_32, %c0_33] : memref<8x128xf32, #tpu.memory_space<vmem>>, vector<8x128xf32>
    tpu.vector_store %arg13[%c0_32, %c0_33], %56 {strides = array<i32>} : memref<8x128xf32, #tpu.memory_space<vmem>>, vector<8x128xf32>,
    return
  }
  func.func @transform_0(%arg0: i32, %arg1: i32) -> (i32, i32) {
    %c0_i32 = arith.constant 0 : i32
    return %arg0, %arg1 : i32, i32
  }
  func.func @transform_1(%arg0: i32, %arg1: i32) -> (i32, i32) {
    %c0_i32 = arith.constant 0 : i32
    %c0_i32_0 = arith.constant 0 : i32
    return %arg1, %c0_i32 : i32, i32
  }
  func.func @transform_2(%arg0: i32, %arg1: i32) -> (i32, i32) {
    %c0_i32 = arith.constant 0 : i32
    %c0_i32_0 = arith.constant 0 : i32
    %c0_i32_1 = arith.constant 0 : i32
    return %c0_i32, %c0_i32_0 : i32, i32
  }
  func.func @transform_3(%arg0: i32, %arg1: i32) -> (i32, i32) {
    %c0_i32 = arith.constant 0 : i32
    %c0_i32_0 = arith.constant 0 : i32
    %c0_i32_1 = arith.constant 0 : i32
    return %c0_i32, %c0_i32_0 : i32, i32
  }
  func.func @transform_4(%arg0: i32, %arg1: i32) -> (i32, i32) {
    %c0_i32 = arith.constant 0 : i32
    %c0_i32_0 = arith.constant 0 : i32
    %c0_i32_1 = arith.constant 0 : i32
    return %c0_i32, %c0_i32_0 : i32, i32
  }
  func.func @transform_5(%arg0: i32, %arg1: i32) -> (i32, i32) {
    %c0_i32 = arith.constant 0 : i32
    %c0_i32_0 = arith.constant 0 : i32
    %c0_i32_1 = arith.constant 0 : i32
    return %c0_i32, %c0_i32_0 : i32, i32
  }
  func.func @transform_6(%arg0: i32, %arg1: i32) -> (i32, i32) {
    %c0_i32 = arith.constant 0 : i32
    %c0_i32_0 = arith.constant 0 : i32
    %c0_i32_1 = arith.constant 0 : i32
    return %c0_i32, %c0_i32_0 : i32, i32
  }
  func.func @transform_7(%arg0: i32, %arg1: i32) -> (i32, i32) {
    %c0_i32 = arith.constant 0 : i32
    %c0_i32_0 = arith.constant 0 : i32
    %c0_i32_1 = arith.constant 0 : i32
    return %c0_i32, %c0_i32_0 : i32, i32
  }
  func.func @transform_8(%arg0: i32, %arg1: i32) -> (i32, i32) {
    %c0_i32 = arith.constant 0 : i32
    %c0_i32_0 = arith.constant 0 : i32
    %c0_i32_1 = arith.constant 0 : i32
    return %c0_i32, %c0_i32_0 : i32, i32
  }
  func.func @transform_9(%arg0: i32, %arg1: i32) -> (i32, i32) {
    %c0_i32 = arith.constant 0 : i32
    %c0_i32_0 = arith.constant 0 : i32
    %c0_i32_1 = arith.constant 0 : i32
    return %c0_i32, %c0_i32_0 : i32, i32
  }
  func.func @transform_10(%arg0: i32, %arg1: i32) -> (i32, i32) {
    %c0_i32 = arith.constant 0 : i32
    %c0_i32_0 = arith.constant 0 : i32
    %c0_i32_1 = arith.constant 0 : i32
    return %c0_i32, %c0_i32_0 : i32, i32
  }
  func.func @transform_11(%arg0: i32, %arg1: i32) -> (i32, i32) {
    %c0_i32 = arith.constant 0 : i32
    %c0_i32_0 = arith.constant 0 : i32
    return %arg0, %c0_i32 : i32, i32
  }
}

</mosaic_0001>

<llo_original>
// kernel: tpu_custom_call.1
$region0: #{tpu_custom_call.1}
  #allocation0 [shape = 'u32[]', space=smem, size = 0x4, offset = 0x4, fixed_abs, tag = 'smem constant byte address 0x4 - core index']
  #allocation1 [shape = 'u32[144,128]{1,0:T(1,128)}', space=vmem, size = 0x12000, scoped, tag = 'internal scratch']
  %s0 = inlined_call_operand.hbm [shape: f32[8,32], index: 0, kind: input, shape index: {}]
  %s1 = inlined_call_operand.hbm [shape: bf16[32,128], index: 1, kind: input, shape index: {}]
  %s2 = inlined_call_operand.vmem [shape: f32[1,128], index: 2, kind: input, shape index: {}]
  %s3 = inlined_call_operand.vmem [shape: f32[1,128], index: 3, kind: input, shape index: {}]
  %s4 = inlined_call_operand.vmem [shape: f32[1,128], index: 4, kind: input, shape index: {}]
  %s5 = inlined_call_operand.hbm [shape: bf16[128,128], index: 5, kind: input, shape index: {}]
  %s6 = inlined_call_operand.vmem [shape: f32[1,128], index: 6, kind: input, shape index: {}]
  %s7 = inlined_call_operand.hbm [shape: bf16[128,128], index: 7, kind: input, shape index: {}]
  %s8 = inlined_call_operand.vmem [shape: f32[1,128], index: 8, kind: input, shape index: {}]
  %s9 = inlined_call_operand.hbm [shape: bf16[128,128], index: 9, kind: input, shape index: {}]
  %s10 = inlined_call_operand.vmem [shape: f32[1,128], index: 10, kind: input, shape index: {}]
  %s11 = inlined_call_operand.hbm [shape: f32[8,128], index: 11, kind: output, shape index: {}]
  %s12 = sld [smem:[#allocation0]]
  $region74: #{tpu_custom_call.1} parent=0
    _
  %s14 = ssub.s32 1, %s12
  %s15 = scalar_select 0, %s14, %s12
  $region1: #{tpu_custom_call.1} parent=0
    #allocation2 [shape = 'u8[4096]{0}', space=vmem, size = 0x1000, scoped, tag = 'input window, operand 0, single buffered']
    #allocation3 [shape = 's32[1]{0}', space=sflag, size = 0x4, scoped, tag = 'scoped memory for tpu_custom_call.1']
    #allocation4 [shape = 's32[1]{0}', space=sflag, size = 0x4, scoped, tag = 'scoped memory for tpu_custom_call.1']
    #allocation5 [shape = 'u8[8192]{0}', space=vmem, size = 0x2000, scoped, tag = 'input window, operand 1, single buffered']
    #allocation6 [shape = 's32[1]{0}', space=sflag, size = 0x4, scoped, tag = 'scoped memory for tpu_custom_call.1']
    #allocation7 [shape = 'u8[32768]{0}', space=vmem, size = 0x8000, scoped, tag = 'input window, operand 5, single buffered']
    #allocation8 [shape = 'u8[32768]{0}', space=vmem, size = 0x8000, scoped, tag = 'input window, operand 7, single buffered']
    #allocation9 [shape = 's32[1]{0}', space=sflag, size = 0x4, scoped, tag = 'scoped memory for tpu_custom_call.1']
    #allocation10 [shape = 'u8[32768]{0}', space=vmem, size = 0x8000, scoped, tag = 'input window, operand 9, single buffered']
    #allocation11 [shape = 'u8[4096]{0}', space=vmem, size = 0x1000, scoped, tag = 'output window, operand 0, single buffered']
    %16 = vsyncpa [#allocation3], 0
    %17 = vsyncpa [#allocation6], 0
    %18 = vsyncpa [#allocation9], 0
    %19 = vsyncpa [#allocation4], 0
    // Predicated region
    $region2: #{tpu_custom_call.1} parent=1 // pred_check
      _
    $region3: #{tpu_custom_call.1} parent=1 // pred_check_branch
      %21 = sbr.rel (0) target = $region5
    $region4: #{tpu_custom_call.1} parent=1 // pred_region
      %s23 = ssub.s32 128, 128
      %24 = vsyncadd [#allocation3], %s23
      %s26 = sshll.u32 [#allocation2], 4
      %s27 = int_to_ptr.vmem [resolvable:$true] %s26
      %29 = dma.hbm_to_vmem [thread:$0]  %s0, 128, %s27, [#allocation3]
    $region5: #{tpu_custom_call.1} parent=1 // pred_fallthru
      _
    // Predicated region
    $region6: #{tpu_custom_call.1} parent=1 // pred_check
      _
    $region7: #{tpu_custom_call.1} parent=1 // pred_check_branch
      %31 = sbr.rel (0) target = $region9
    $region8: #{tpu_custom_call.1} parent=1 // pred_region
      %s33 = ssub.s32 256, 256
      %34 = vsyncadd [#allocation6], %s33
      %s35 = sshll.u32 [#allocation5], 4
      %s36 = int_to_ptr.vmem [resolvable:$true] %s35
      %41 = dma.hbm_to_vmem [thread:$0]  %s1, 256, %s36, [#allocation6], 64, 64, 4
    $region9: #{tpu_custom_call.1} parent=1 // pred_fallthru
      _
    // Predicated region
    $region10: #{tpu_custom_call.1} parent=1 // pred_check
      _
    $region11: #{tpu_custom_call.1} parent=1 // pred_check_branch
      %43 = sbr.rel (0) target = $region13
    $region12: #{tpu_custom_call.1} parent=1 // pred_region
      _
    $region13: #{tpu_custom_call.1} parent=1 // pred_fallthru
      _
    // Predicated region
    $region14: #{tpu_custom_call.1} parent=1 // pred_check
      _
    $region15: #{tpu_custom_call.1} parent=1 // pred_check_branch
      %45 = sbr.rel (0) target = $region17
    $region16: #{tpu_custom_call.1} parent=1 // pred_region
      _
    $region17: #{tpu_custom_call.1} parent=1 // pred_fallthru
      _
    // Predicated region
    $region18: #{tpu_custom_call.1} parent=1 // pred_check
      _
    $region19: #{tpu_custom_call.1} parent=1 // pred_check_branch
      %47 = sbr.rel (0) target = $region21
    $region20: #{tpu_custom_call.1} parent=1 // pred_region
      _
    $region21: #{tpu_custom_call.1} parent=1 // pred_fallthru
      _
    // Predicated region
    $region22: #{tpu_custom_call.1} parent=1 // pred_check
      _
    $region23: #{tpu_custom_call.1} parent=1 // pred_check_branch
      %49 = sbr.rel (0) target = $region25
    $region24: #{tpu_custom_call.1} parent=1 // pred_region
      %s51 = ssub.s32 1024, 1024
      %52 = vsyncadd [#allocation6], %s51
      %s53 = sshll.u32 [#allocation7], 4
      %s54 = int_to_ptr.vmem [resolvable:$true] %s53
      %59 = dma.hbm_to_vmem [thread:$0]  %s5, 1024, %s54, [#allocation6], 64, 64, 4
    $region25: #{tpu_custom_call.1} parent=1 // pred_fallthru
      _
    // Predicated region
    $region26: #{tpu_custom_call.1} parent=1 // pred_check
      _
    $region27: #{tpu_custom_call.1} parent=1 // pred_check_branch
      %61 = sbr.rel (0) target = $region29
    $region28: #{tpu_custom_call.1} parent=1 // pred_region
      _
    $region29: #{tpu_custom_call.1} parent=1 // pred_fallthru
      _
    // Predicated region
    $region30: #{tpu_custom_call.1} parent=1 // pred_check
      _
    $region31: #{tpu_custom_call.1} parent=1 // pred_check_branch
      %63 = sbr.rel (0) target = $region33
    $region32: #{tpu_custom_call.1} parent=1 // pred_region
      %s65 = ssub.s32 1024, 1024
      %66 = vsyncadd [#allocation9], %s65
      %s67 = sshll.u32 [#allocation8], 4
      %s68 = int_to_ptr.vmem [resolvable:$true] %s67
      %73 = dma.hbm_to_vmem [thread:$0]  %s7, 1024, %s68, [#allocation9], 64, 64, 4
    $region33: #{tpu_custom_call.1} parent=1 // pred_fallthru
      _
    // Predicated region
    $region34: #{tpu_custom_call.1} parent=1 // pred_check
      _
    $region35: #{tpu_custom_call.1} parent=1 // pred_check_branch
      %75 = sbr.rel (0) target = $region37
    $region36: #{tpu_custom_call.1} parent=1 // pred_region
      _
    $region37: #{tpu_custom_call.1} parent=1 // pred_fallthru
      _
    // Predicated region
    $region38: #{tpu_custom_call.1} parent=1 // pred_check
      _
    $region39: #{tpu_custom_call.1} parent=1 // pred_check_branch
      %77 = sbr.rel (0) target = $region41
    $region40: #{tpu_custom_call.1} parent=1 // pred_region
      %s79 = ssub.s32 1024, 1024
      %80 = vsyncadd [#allocation9], %s79
      %s81 = sshll.u32 [#allocation10], 4
      %s82 = int_to_ptr.vmem [resolvable:$true] %s81
      %87 = dma.hbm_to_vmem [thread:$0]  %s9, 1024, %s82, [#allocation9], 64, 64, 4
    $region41: #{tpu_custom_call.1} parent=1 // pred_fallthru
      _
    // Predicated region
    $region42: #{tpu_custom_call.1} parent=1 // pred_check
      _
    $region43: #{tpu_custom_call.1} parent=1 // pred_check_branch
      %89 = sbr.rel (0) target = $region45
    $region44: #{tpu_custom_call.1} parent=1 // pred_region
      _
    $region45: #{tpu_custom_call.1} parent=1 // pred_fallthru
      _
    // Predicated region
    $region46: #{tpu_custom_call.1} parent=1 // pred_check
      _
    $region47: #{tpu_custom_call.1} parent=1 // pred_check_branch
      %91 = sbr.rel (0) target = $region49
    $region48: #{tpu_custom_call.1} parent=1 // pred_region
      %92 = dma.done [#allocation3], 128
    $region49: #{tpu_custom_call.1} parent=1 // pred_fallthru
      _
    // Predicated region
    $region50: #{tpu_custom_call.1} parent=1 // pred_check
      _
    $region51: #{tpu_custom_call.1} parent=1 // pred_check_branch
      %94 = sbr.rel (0) target = $region53
    $region52: #{tpu_custom_call.1} parent=1 // pred_region
      %95 = dma.done [#allocation6], 256
    $region53: #{tpu_custom_call.1} parent=1 // pred_fallthru
      _
    // Predicated region
    $region54: #{tpu_custom_call.1} parent=1 // pred_check
      _
    $region55: #{tpu_custom_call.1} parent=1 // pred_check_branch
      %97 = sbr.rel (0) target = $region57
    $region56: #{tpu_custom_call.1} parent=1 // pred_region
      %98 = dma.done [#allocation6], 1024
    $region57: #{tpu_custom_call.1} parent=1 // pred_fallthru
      _
    // Predicated region
    $region58: #{tpu_custom_call.1} parent=1 // pred_check
      _
    $region59: #{tpu_custom_call.1} parent=1 // pred_check_branch
      %100 = sbr.rel (0) target = $region61
    $region60: #{tpu_custom_call.1} parent=1 // pred_region
      %101 = dma.done [#allocation9], 1024
    $region61: #{tpu_custom_call.1} parent=1 // pred_fallthru
      _
    // Predicated region
    $region62: #{tpu_custom_call.1} parent=1 // pred_check
      _
    $region63: #{tpu_custom_call.1} parent=1 // pred_check_branch
      %103 = sbr.rel (0) target = $region65
    $region64: #{tpu_custom_call.1} parent=1 // pred_region
      %104 = dma.done [#allocation9], 1024
    $region65: #{tpu_custom_call.1} parent=1 // pred_fallthru
      _
    %v106 = vld [vmem:[#allocation2] sm:$0xff]
    %v107 = vpack.c.bf16 %v106, %v106
    %v108 = vld [vmem:[#allocation5] sm:$0xf]
    %v109 = vld [vmem:[#allocation5 + $0x4] sm:$0xf]
    %v110 = vld [vmem:[#allocation5 + $0x8] sm:$0xf]
    %v111 = vld [vmem:[#allocation5 + $0xc] sm:$0xf]
    %v112 = vld [vmem:[%s2] sm:$0x1]
    %v114 = vlaneseq
    %v115 = vshrl.u32 %v114, 7
    %v116 = vsub.s32 0, %v115
    %v117 = vrot.slane %v112, %v116
    %v123 = vunpack.c.l.b16 %v108
    %v124 = vunpack.c.l.b16 %v109
    %v125 = vunpack.c.l.b16 %v110
    %v126 = vunpack.c.l.b16 %v111
    %v127 = vpack.c.b16 %v124, %v123
    %v128 = vpack.c.b16 %v126, %v125
    %vm131 = vcmask 261120
    %v133 = vsel %vm131, %v107, 0
    %135 = vmatprep.subr.bf16.mxu0 0
    %136 = vmatpush1.bf16.msra.mxu0 %v127
    %137 = vmatprep.subr.bf16.mxu0 0
    %138 = vmatpush1.bf16.msra.mxu0 %v128
    %139 = vmatprep.subr.bf16.mxu0 0
    %140 = vmatpush1.bf16.msra.mxu0 0
    %141 = vmatprep.subr.bf16.mxu0 0
    %142 = vmatpush1.bf16.msra.mxu0 0
    %143 = vmatprep.subr.bf16.mxu0 0
    %144 = vmatpush1.bf16.msra.mxu0 0
    %145 = vmatprep.subr.bf16.mxu0 0
    %146 = vmatpush1.bf16.msra.mxu0 0
    %147 = vmatprep.subr.bf16.mxu0 0
    %148 = vmatpush1.bf16.msra.mxu0 0
    %149 = vmatprep.subr.bf16.mxu0 0
    %150 = vmatpush1.bf16.msra.mxu0 0
    %151 = vmatprep.subr.bf16.mxu0 0
    %152 = vmatpush1.bf16.msra.mxu0 0
    %153 = vmatprep.subr.bf16.mxu0 0
    %154 = vmatpush1.bf16.msra.mxu0 0
    %155 = vmatprep.subr.bf16.mxu0 0
    %156 = vmatpush1.bf16.msra.mxu0 0
    %157 = vmatprep.subr.bf16.mxu0 0
    %158 = vmatpush1.bf16.msra.mxu0 0
    %159 = vmatprep.subr.bf16.mxu0 0
    %160 = vmatpush1.bf16.msra.mxu0 0
    %161 = vmatprep.subr.bf16.mxu0 0
    %162 = vmatpush1.bf16.msra.mxu0 0
    %163 = vmatprep.subr.bf16.mxu0 0
    %164 = vmatpush1.bf16.msra.mxu0 0
    %165 = vmatprep.subr.bf16.mxu0 0
    %166 = vmatpush1.bf16.msra.mxu0 0
    %167 = vmatprep.mubr.bf16.mxu0 0
    %168 = vmatmul.mubr.bf16.gmra.mrb[0].mxu0 %v133
    %v169 = vpop.f32.mrb[0].mxu0
    %v170 = vadd.f32 %v117, %v169
    %v171 = vpop.f32.mrb[0].mxu0
    %v172 = vpop.f32.mrb[0].mxu0
    %v173 = vpop.f32.mrb[0].mxu0
    %174 = vdwg.mxu0
    %175 = vadd.xlane.f32.xlu0 %v170
    %v176 = vpop.xlane.xlu0 %175
    %v177 = vmul.f32 %v170, %v170
    %178 = vadd.xlane.f32.xlu0 %v177
    %v179 = vpop.xlane.xlu0 %178
    %v180 = vmul.f32 %v176, 0.03125
    %v181 = vmul.f32 %v179, 0.03125
    %v182 = vmul.f32 %v180, %v180
    %v183 = vsub.f32 %v181, %v182
    %v184 = vmax.f32 %v183, 0.0
    %v185 = vsub.f32 %v170, %v180
    %v186 = vadd.f32 %v184, 1e-05
    %v187 = vrsqrt.pop %v186
    %v188 = vmul.f32 %v185, %v187
    %v189 = vld [vmem:[%s3] sm:$0x1]
    %v191 = vlaneseq
    %v192 = vshrl.u32 %v191, 7
    %v193 = vsub.s32 0, %v192
    %v194 = vrot.slane %v189, %v193
    %v196 = vmul.f32 %v188, %v194
    %v197 = vld [vmem:[%s4] sm:$0x1]
    %v199 = vlaneseq
    %v200 = vshrl.u32 %v199, 7
    %v201 = vsub.s32 0, %v200
    %v202 = vrot.slane %v197, %v201
    %v204 = vadd.f32 %v196, %v202
    %v205 = vpack.c.bf16 %v204, %v204
    %v206 = vtanh.bf16.pop %v205
    %v207 = vld [vmem:[#allocation7] sm:$0xf]
    %v208 = vld [vmem:[#allocation7 + $0x4] sm:$0xf]
    %v209 = vld [vmem:[#allocation7 + $0x8] sm:$0xf]
    %v210 = vld [vmem:[#allocation7 + $0xc] sm:$0xf]
    %v211 = vld [vmem:[#allocation7 + $0x10] sm:$0xf]
    %v212 = vld [vmem:[#allocation7 + $0x14] sm:$0xf]
    %v213 = vld [vmem:[#allocation7 + $0x18] sm:$0xf]
    %v214 = vld [vmem:[#allocation7 + $0x1c] sm:$0xf]
    %v215 = vld [vmem:[#allocation7 + $0x20] sm:$0xf]
    %v216 = vld [vmem:[#allocation7 + $0x24] sm:$0xf]
    %v217 = vld [vmem:[#allocation7 + $0x28] sm:$0xf]
    %v218 = vld [vmem:[#allocation7 + $0x2c] sm:$0xf]
    %v219 = vld [vmem:[#allocation7 + $0x30] sm:$0xf]
    %v220 = vld [vmem:[#allocation7 + $0x34] sm:$0xf]
    %v221 = vld [vmem:[#allocation7 + $0x38] sm:$0xf]
    %v222 = vld [vmem:[#allocation7 + $0x3c] sm:$0xf]
    %v223 = vld [vmem:[%s6] sm:$0x1]
    %v225 = vlaneseq
    %v226 = vshrl.u32 %v225, 7
    %v227 = vsub.s32 0, %v226
    %v228 = vrot.slane %v223, %v227
    %v246 = vunpack.c.l.b16 %v207
    %v247 = vunpack.c.l.b16 %v208
    %v248 = vunpack.c.l.b16 %v209
    %v249 = vunpack.c.l.b16 %v210
    %v250 = vunpack.c.l.b16 %v211
    %v251 = vunpack.c.l.b16 %v212
    %v252 = vunpack.c.l.b16 %v213
    %v253 = vunpack.c.l.b16 %v214
    %v254 = vunpack.c.l.b16 %v215
    %v255 = vunpack.c.l.b16 %v216
    %v256 = vunpack.c.l.b16 %v217
    %v257 = vunpack.c.l.b16 %v218
    %v258 = vunpack.c.l.b16 %v219
    %v259 = vunpack.c.l.b16 %v220
    %v260 = vunpack.c.l.b16 %v221
    %v261 = vunpack.c.l.b16 %v222
    %v262 = vpack.c.b16 %v247, %v246
    %v263 = vpack.c.b16 %v249, %v248
    %v264 = vpack.c.b16 %v251, %v250
    %v265 = vpack.c.b16 %v253, %v252
    %v266 = vpack.c.b16 %v255, %v254
    %v267 = vpack.c.b16 %v257, %v256
    %v268 = vpack.c.b16 %v259, %v258
    %v269 = vpack.c.b16 %v261, %v260
    %278 = vmatprep.subr.bf16.mxu0 0
    %279 = vmatpush1.bf16.msra.mxu0 %v262
    %280 = vmatprep.subr.bf16.mxu0 0
    %281 = vmatpush1.bf16.msra.mxu0 %v263
    %282 = vmatprep.subr.bf16.mxu0 0
    %283 = vmatpush1.bf16.msra.mxu0 %v264
    %284 = vmatprep.subr.bf16.mxu0 0
    %285 = vmatpush1.bf16.msra.mxu0 %v265
    %286 = vmatprep.subr.bf16.mxu0 0
    %287 = vmatpush1.bf16.msra.mxu0 %v266
    %288 = vmatprep.subr.bf16.mxu0 0
    %289 = vmatpush1.bf16.msra.mxu0 %v267
    %290 = vmatprep.subr.bf16.mxu0 0
    %291 = vmatpush1.bf16.msra.mxu0 %v268
    %292 = vmatprep.subr.bf16.mxu0 0
    %293 = vmatpush1.bf16.msra.mxu0 %v269
    %294 = vmatprep.subr.bf16.mxu0 0
    %295 = vmatpush1.bf16.msra.mxu0 0
    %296 = vmatprep.subr.bf16.mxu0 0
    %297 = vmatpush1.bf16.msra.mxu0 0
    %298 = vmatprep.subr.bf16.mxu0 0
    %299 = vmatpush1.bf16.msra.mxu0 0
    %300 = vmatprep.subr.bf16.mxu0 0
    %301 = vmatpush1.bf16.msra.mxu0 0
    %302 = vmatprep.subr.bf16.mxu0 0
    %303 = vmatpush1.bf16.msra.mxu0 0
    %304 = vmatprep.subr.bf16.mxu0 0
    %305 = vmatpush1.bf16.msra.mxu0 0
    %306 = vmatprep.subr.bf16.mxu0 0
    %307 = vmatpush1.bf16.msra.mxu0 0
    %308 = vmatprep.subr.bf16.mxu0 0
    %309 = vmatpush1.bf16.msra.mxu0 0
    %310 = vmatprep.mubr.bf16.mxu0 0
    %311 = vmatmul.mubr.bf16.gmra.mrb[0].mxu0 %v206
    %v312 = vpop.f32.mrb[0].mxu0
    %v313 = vadd.f32 %v228, %v312
    %v314 = vpop.f32.mrb[0].mxu0
    %v315 = vpop.f32.mrb[0].mxu0
    %v316 = vpop.f32.mrb[0].mxu0
    %317 = vdwg.mxu0
    %v318 = vpack.c.bf16 %v313, %v313
    %v319 = vmax.bf16 %v318, 0
    %v320 = vld [vmem:[#allocation8] sm:$0xf]
    %v321 = vld [vmem:[#allocation8 + $0x4] sm:$0xf]
    %v322 = vld [vmem:[#allocation8 + $0x8] sm:$0xf]
    %v323 = vld [vmem:[#allocation8 + $0xc] sm:$0xf]
    %v324 = vld [vmem:[#allocation8 + $0x10] sm:$0xf]
    %v325 = vld [vmem:[#allocation8 + $0x14] sm:$0xf]
    %v326 = vld [vmem:[#allocation8 + $0x18] sm:$0xf]
    %v327 = vld [vmem:[#allocation8 + $0x1c] sm:$0xf]
    %v328 = vld [vmem:[#allocation8 + $0x20] sm:$0xf]
    %v329 = vld [vmem:[#allocation8 + $0x24] sm:$0xf]
    %v330 = vld [vmem:[#allocation8 + $0x28] sm:$0xf]
    %v331 = vld [vmem:[#allocation8 + $0x2c] sm:$0xf]
    %v332 = vld [vmem:[#allocation8 + $0x30] sm:$0xf]
    %v333 = vld [vmem:[#allocation8 + $0x34] sm:$0xf]
    %v334 = vld [vmem:[#allocation8 + $0x38] sm:$0xf]
    %v335 = vld [vmem:[#allocation8 + $0x3c] sm:$0xf]
    %v336 = vld [vmem:[%s8] sm:$0x1]
    %v338 = vlaneseq
    %v339 = vshrl.u32 %v338, 7
    %v340 = vsub.s32 0, %v339
    %v341 = vrot.slane %v336, %v340
    %v359 = vunpack.c.l.b16 %v320
    %v360 = vunpack.c.l.b16 %v321
    %v361 = vunpack.c.l.b16 %v322
    %v362 = vunpack.c.l.b16 %v323
    %v363 = vunpack.c.l.b16 %v324
    %v364 = vunpack.c.l.b16 %v325
    %v365 = vunpack.c.l.b16 %v326
    %v366 = vunpack.c.l.b16 %v327
    %v367 = vunpack.c.l.b16 %v328
    %v368 = vunpack.c.l.b16 %v329
    %v369 = vunpack.c.l.b16 %v330
    %v370 = vunpack.c.l.b16 %v331
    %v371 = vunpack.c.l.b16 %v332
    %v372 = vunpack.c.l.b16 %v333
    %v373 = vunpack.c.l.b16 %v334
    %v374 = vunpack.c.l.b16 %v335
    %v375 = vpack.c.b16 %v360, %v359
    %v376 = vpack.c.b16 %v362, %v361
    %v377 = vpack.c.b16 %v364, %v363
    %v378 = vpack.c.b16 %v366, %v365
    %v379 = vpack.c.b16 %v368, %v367
    %v380 = vpack.c.b16 %v370, %v369
    %v381 = vpack.c.b16 %v372, %v371
    %v382 = vpack.c.b16 %v374, %v373
    %391 = vmatprep.subr.bf16.mxu0 0
    %392 = vmatpush1.bf16.msra.mxu0 %v375
    %393 = vmatprep.subr.bf16.mxu0 0
    %394 = vmatpush1.bf16.msra.mxu0 %v376
    %395 = vmatprep.subr.bf16.mxu0 0
    %396 = vmatpush1.bf16.msra.mxu0 %v377
    %397 = vmatprep.subr.bf16.mxu0 0
    %398 = vmatpush1.bf16.msra.mxu0 %v378
    %399 = vmatprep.subr.bf16.mxu0 0
    %400 = vmatpush1.bf16.msra.mxu0 %v379
    %401 = vmatprep.subr.bf16.mxu0 0
    %402 = vmatpush1.bf16.msra.mxu0 %v380
    %403 = vmatprep.subr.bf16.mxu0 0
    %404 = vmatpush1.bf16.msra.mxu0 %v381
    %405 = vmatprep.subr.bf16.mxu0 0
    %406 = vmatpush1.bf16.msra.mxu0 %v382
    %407 = vmatprep.subr.bf16.mxu0 0
    %408 = vmatpush1.bf16.msra.mxu0 0
    %409 = vmatprep.subr.bf16.mxu0 0
    %410 = vmatpush1.bf16.msra.mxu0 0
    %411 = vmatprep.subr.bf16.mxu0 0
    %412 = vmatpush1.bf16.msra.mxu0 0
    %413 = vmatprep.subr.bf16.mxu0 0
    %414 = vmatpush1.bf16.msra.mxu0 0
    %415 = vmatprep.subr.bf16.mxu0 0
    %416 = vmatpush1.bf16.msra.mxu0 0
    %417 = vmatprep.subr.bf16.mxu0 0
    %418 = vmatpush1.bf16.msra.mxu0 0
    %419 = vmatprep.subr.bf16.mxu0 0
    %420 = vmatpush1.bf16.msra.mxu0 0
    %421 = vmatprep.subr.bf16.mxu0 0
    %422 = vmatpush1.bf16.msra.mxu0 0
    %423 = vmatprep.mubr.bf16.mxu0 0
    %424 = vmatmul.mubr.bf16.gmra.mrb[0].mxu0 %v319
    %v425 = vpop.f32.mrb[0].mxu0
    %v426 = vadd.f32 %v341, %v425
    %v427 = vpop.f32.mrb[0].mxu0
    %v428 = vpop.f32.mrb[0].mxu0
    %v429 = vpop.f32.mrb[0].mxu0
    %430 = vdwg.mxu0
    %v431 = vpack.c.bf16 %v426, %v426
    %v432 = vmax.bf16 %v431, 0
    %v433 = vld [vmem:[#allocation10] sm:$0xf]
    %v434 = vld [vmem:[#allocation10 + $0x4] sm:$0xf]
    %v435 = vld [vmem:[#allocation10 + $0x8] sm:$0xf]
    %v436 = vld [vmem:[#allocation10 + $0xc] sm:$0xf]
    %v437 = vld [vmem:[#allocation10 + $0x10] sm:$0xf]
    %v438 = vld [vmem:[#allocation10 + $0x14] sm:$0xf]
    %v439 = vld [vmem:[#allocation10 + $0x18] sm:$0xf]
    %v440 = vld [vmem:[#allocation10 + $0x1c] sm:$0xf]
    %v441 = vld [vmem:[#allocation10 + $0x20] sm:$0xf]
    %v442 = vld [vmem:[#allocation10 + $0x24] sm:$0xf]
    %v443 = vld [vmem:[#allocation10 + $0x28] sm:$0xf]
    %v444 = vld [vmem:[#allocation10 + $0x2c] sm:$0xf]
    %v445 = vld [vmem:[#allocation10 + $0x30] sm:$0xf]
    %v446 = vld [vmem:[#allocation10 + $0x34] sm:$0xf]
    %v447 = vld [vmem:[#allocation10 + $0x38] sm:$0xf]
    %v448 = vld [vmem:[#allocation10 + $0x3c] sm:$0xf]
    %v449 = vld [vmem:[%s10] sm:$0x1]
    %v451 = vlaneseq
    %v452 = vshrl.u32 %v451, 7
    %v453 = vsub.s32 0, %v452
    %v454 = vrot.slane %v449, %v453
    %v472 = vunpack.c.l.b16 %v433
    %v473 = vunpack.c.l.b16 %v434
    %v474 = vunpack.c.l.b16 %v435
    %v475 = vunpack.c.l.b16 %v436
    %v476 = vunpack.c.l.b16 %v437
    %v477 = vunpack.c.l.b16 %v438
    %v478 = vunpack.c.l.b16 %v439
    %v479 = vunpack.c.l.b16 %v440
    %v480 = vunpack.c.l.b16 %v441
    %v481 = vunpack.c.l.b16 %v442
    %v482 = vunpack.c.l.b16 %v443
    %v483 = vunpack.c.l.b16 %v444
    %v484 = vunpack.c.l.b16 %v445
    %v485 = vunpack.c.l.b16 %v446
    %v486 = vunpack.c.l.b16 %v447
    %v487 = vunpack.c.l.b16 %v448
    %v488 = vpack.c.b16 %v473, %v472
    %v489 = vpack.c.b16 %v475, %v474
    %v490 = vpack.c.b16 %v477, %v476
    %v491 = vpack.c.b16 %v479, %v478
    %v492 = vpack.c.b16 %v481, %v480
    %v493 = vpack.c.b16 %v483, %v482
    %v494 = vpack.c.b16 %v485, %v484
    %v495 = vpack.c.b16 %v487, %v486
    %504 = vmatprep.subr.bf16.mxu0 0
    %505 = vmatpush1.bf16.msra.mxu0 %v488
    %506 = vmatprep.subr.bf16.mxu0 0
    %507 = vmatpush1.bf16.msra.mxu0 %v489
    %508 = vmatprep.subr.bf16.mxu0 0
    %509 = vmatpush1.bf16.msra.mxu0 %v490
    %510 = vmatprep.subr.bf16.mxu0 0
    %511 = vmatpush1.bf16.msra.mxu0 %v491
    %512 = vmatprep.subr.bf16.mxu0 0
    %513 = vmatpush1.bf16.msra.mxu0 %v492
    %514 = vmatprep.subr.bf16.mxu0 0
    %515 = vmatpush1.bf16.msra.mxu0 %v493
    %516 = vmatprep.subr.bf16.mxu0 0
    %517 = vmatpush1.bf16.msra.mxu0 %v494
    %518 = vmatprep.subr.bf16.mxu0 0
    %519 = vmatpush1.bf16.msra.mxu0 %v495
    %520 = vmatprep.subr.bf16.mxu0 0
    %521 = vmatpush1.bf16.msra.mxu0 0
    %522 = vmatprep.subr.bf16.mxu0 0
    %523 = vmatpush1.bf16.msra.mxu0 0
    %524 = vmatprep.subr.bf16.mxu0 0
    %525 = vmatpush1.bf16.msra.mxu0 0
    %526 = vmatprep.subr.bf16.mxu0 0
    %527 = vmatpush1.bf16.msra.mxu0 0
    %528 = vmatprep.subr.bf16.mxu0 0
    %529 = vmatpush1.bf16.msra.mxu0 0
    %530 = vmatprep.subr.bf16.mxu0 0
    %531 = vmatpush1.bf16.msra.mxu0 0
    %532 = vmatprep.subr.bf16.mxu0 0
    %533 = vmatpush1.bf16.msra.mxu0 0
    %534 = vmatprep.subr.bf16.mxu0 0
    %535 = vmatpush1.bf16.msra.mxu0 0
    %536 = vmatprep.mubr.bf16.mxu0 0
    %537 = vmatmul.mubr.bf16.gmra.mrb[0].mxu0 %v432
    %v538 = vpop.f32.mrb[0].mxu0
    %v539 = vadd.f32 %v454, %v538
    %v540 = vpop.f32.mrb[0].mxu0
    %v541 = vpop.f32.mrb[0].mxu0
    %v542 = vpop.f32.mrb[0].mxu0
    %543 = vdwg.mxu0
    %v544 = vtanh.pop %v539
    %545 = vst [vmem:[#allocation11] sm:$0xff] %v544
    // Predicated region
    $region66: #{tpu_custom_call.1} parent=1 // pred_check
      _
    $region67: #{tpu_custom_call.1} parent=1 // pred_check_branch
      %547 = sbr.rel (0) target = $region69
    $region68: #{tpu_custom_call.1} parent=1 // pred_region
      %s549 = ssub.s32 128, 128
      %550 = vsyncadd [#allocation4], %s549
      %s552 = sshll.u32 [#allocation11], 4
      %s553 = int_to_ptr.vmem [resolvable:$true] %s552
      %555 = dma.vmem_to_hbm [thread:$0]  %s553, 128, %s11, [#allocation4]
    $region69: #{tpu_custom_call.1} parent=1 // pred_fallthru
      _
    // Predicated region
    $region70: #{tpu_custom_call.1} parent=1 // pred_check
      _
    $region71: #{tpu_custom_call.1} parent=1 // pred_check_branch
      %557 = sbr.rel (0) target = $region73
    $region72: #{tpu_custom_call.1} parent=1 // pred_region
      %558 = dma.done [#allocation4], 128
    $region73: #{tpu_custom_call.1} parent=1 // pred_fallthru
      _
    %559 = vsyncpa [#allocation3], 1
    %560 = vsyncpa [#allocation6], 1
    %561 = vsyncpa [#allocation9], 1
    %562 = vsyncpa [#allocation4], 1

</llo_original>
